<compile_context>
chip_gen: v7x
topology: tpu7x:2x2x1
jax: 0.10.0
libtpu: 0.0.40
codegen_flags: <defaults>
</compile_context>

<pallas_src>
import jax
import jax.numpy as jnp
from jax.experimental import pallas as pl
from jax.experimental.pallas import tpu as pltpu

NEG_SLOPE = 0.01  # F.leaky_relu default negative_slope


def _leaky_relu(v):
    return jnp.where(v > 0, v, NEG_SLOPE * v)


def _softplus(v):
    # matches torch.nn.functional.softplus(beta=1, threshold=20)
    return jnp.where(v > 20.0, v, jnp.log1p(jnp.exp(v)))


def _round_up(v, m):
    return ((v + m - 1) // m) * m


def tsvae_forward_pallas(x_aug, c_s, eps_z, params, *, max_tb=2048):
    """Runs encode -> reparameterize -> decode on already-augmented inputs.

    Assumes c_dim > 0 (the demo module is conditional).
    """
    # TODO(synk): c_dim == 0 path (unconditional VAE) would drop the cmat matmul entirely.
    B, x_dim = x_aug.shape
    c_dim = c_s.shape[1]
    z_dim = eps_z.shape[1]
    enc0 = params["w_enc0"].shape[1]
    enc1 = params["w_enc1"].shape[1]
    dec0 = params["w_dec0"].shape[1]
    dec1 = params["w_dec1"].shape[1]
    f32 = jnp.float32

    # ---- split weights along fan-in, fuse along fan-out (host, trace-time constants) ------
    w0x = params["w_enc0"][:x_dim]              # (x,    enc0)
    w0c = params["w_enc0"][x_dim:]              # (c,    enc0)
    w1h = params["w_enc1"][:enc0]               # (enc0, enc1)
    w1c = params["w_enc1"][enc0:]               # (c,    enc1)
    d0z = params["w_dec0"][:z_dim]              # (z,    dec0)
    d0c = params["w_dec0"][z_dim:]              # (c,    dec0)
    d1h = params["w_dec1"][:dec0]               # (dec0, dec1)
    d1c = params["w_dec1"][dec0:]               # (c,    dec1)
    wl = params["w_logits"]                     # (dec1, x)
    wmv = jnp.concatenate([params["w_mean"], params["w_var"]], axis=1)     # (enc1, 2z)
    wc_all = jnp.concatenate([w0c, w1c, d0c, d1c], axis=1)                 # (c, enc0+enc1+dec0+dec1)
    wc_n = enc0 + enc1 + dec0 + dec1

    bias = jnp.concatenate(
        [params["b_enc0"], params["b_enc1"], params["b_mean"], params["b_var"],
         params["b_dec0"], params["b_dec1"], params["b_logits"]], axis=1)  # (1, b_total)
    b_total = bias.shape[1]

    # ---- pack everything into ONE (K_max, W_total) slab with static offsets ---------------
    pieces = [w0x, w1h, wc_all, wmv, d0z, d1h, wl, bias]
    K_max = _round_up(max(p.shape[0] for p in pieces), 8)
    offs, col = [], 0
    for p in pieces:
        offs.append(col)
        col += p.shape[1]
    W_total = col
    slab = jnp.concatenate(
        [jnp.pad(p.astype(f32), ((0, K_max - p.shape[0]), (0, 0))) for p in pieces], axis=1)
    (o_w0x, o_w1h, o_wc, o_wmv, o_d0z, o_d1h, o_wl, o_b) = offs

    # ---- batch tiling ----------------------------------------------------------------------
    B8 = _round_up(max(B, 1), 8)
    half = _round_up(-(-B // 2), 8)
    if half >= 256:
        # large batch: >=2 grid steps so v7x megacore can shard; big tiles amortize overhead
        tb = min(max_tb, half)
    else:
        # small batch: single step (v5e/v6e are 1-TC chips -> any split is a serial loop)
        tb = min(max_tb, B8)
    B_pad = _round_up(max(B, 1), tb)

    def prep(a):
        if a.dtype != f32:
            a = a.astype(f32)
        if B_pad != B:
            a = jnp.pad(a, ((0, B_pad - B), (0, 0)))
        return a

    xv, cv, ev = prep(x_aug), prep(c_s), prep(eps_z)

    out_raw = 3 * z_dim + x_dim  # [z_mean | z_var | z | x_recon], no lane padding in HBM

    def kernel(x_ref, c_ref, e_ref, w_ref, o_ref):
        x = x_ref[...]
        c = c_ref[...]
        eps = e_ref[...]
        W = w_ref[...]

        # static slices of the packed weight/bias slab (compile-time offsets)
        w0x_v = W[:x_dim, o_w0x:o_w0x + enc0]
        w1h_v = W[:enc0, o_w1h:o_w1h + enc1]
        wc_v = W[:c_dim, o_wc:o_wc + wc_n]
        wmv_v = W[:enc1, o_wmv:o_wmv + 2 * z_dim]
        d0z_v = W[:z_dim, o_d0z:o_d0z + dec0]
        d1h_v = W[:dec0, o_d1h:o_d1h + dec1]
        wl_v = W[:dec1, o_wl:o_wl + x_dim]
        b = W[0:1, o_b:o_b + b_total]
        b0 = b[:, 0:enc0]
        b1 = b[:, enc0:enc0 + enc1]
        bmv = b[:, enc0 + enc1:enc0 + enc1 + 2 * z_dim]
        bd0 = b[:, enc0 + enc1 + 2 * z_dim:enc0 + enc1 + 2 * z_dim + dec0]
        bd1 = b[:, enc0 + enc1 + 2 * z_dim + dec0:enc0 + enc1 + 2 * z_dim + dec0 + dec1]
        bl = b[:, enc0 + enc1 + 2 * z_dim + dec0 + dec1:]

        # ---- all four c-conditioned contributions in ONE matmul
        cmat = jnp.dot(c, wc_v, preferred_element_type=f32)
        cm0 = cmat[:, 0:enc0]
        cm1 = cmat[:, enc0:enc0 + enc1]
        cd0 = cmat[:, enc0 + enc1:enc0 + enc1 + dec0]
        cd1 = cmat[:, enc0 + enc1 + dec0:]

        # ---- encode(): leaky_relu(Linear(concat([h, c]))) x 2
        h = _leaky_relu(jnp.dot(x, w0x_v, preferred_element_type=f32) + cm0 + b0)
        h = _leaky_relu(jnp.dot(h, w1h_v, preferred_element_type=f32) + cm1 + b1)

        # ---- fused fc_mean | fc_var
        mv = jnp.dot(h, wmv_v, preferred_element_type=f32) + bmv
        z_mean = mv[:, :z_dim]
        z_var = _softplus(mv[:, z_dim:])

        # ---- reparameterize(): Normal(loc=z_mean, scale=z_var).rsample()
        z = z_mean + z_var * eps

        # ---- decode(): leaky_relu(Linear(concat([h, c]))) x 2, then fc_logits
        d = _leaky_relu(jnp.dot(z, d0z_v, preferred_element_type=f32) + cd0 + bd0)
        d = _leaky_relu(jnp.dot(d, d1h_v, preferred_element_type=f32) + cd1 + bd1)
        x_recon = jnp.dot(d, wl_v, preferred_element_type=f32) + bl

        # single store, payload lanes only: [z_mean | z_var | z | x_recon]
        o_ref[...] = jnp.concatenate([z_mean, z_var, z, x_recon], axis=-1)

    flops = 2 * B_pad * (x_dim * enc0 + c_dim * wc_n + enc0 * enc1
                         + enc1 * 2 * z_dim + z_dim * dec0 + dec0 * dec1 + dec1 * x_dim)
    bytes_accessed = 4 * (B_pad * (x_dim + c_dim + z_dim + out_raw) + K_max * W_total)
    cost = pl.CostEstimate(flops=int(flops),
                           transcendentals=int(2 * B_pad * z_dim),
                           bytes_accessed=int(bytes_accessed))

    out = pl.pallas_call(
        kernel,
        grid=(B_pad // tb,),
        in_specs=[pl.BlockSpec((tb, x_dim), lambda i: (i, 0)),
                  pl.BlockSpec((tb, c_dim), lambda i: (i, 0)),
                  pl.BlockSpec((tb, z_dim), lambda i: (i, 0)),
                  pl.BlockSpec((K_max, W_total), lambda i: (0, 0))],
        out_specs=pl.BlockSpec((tb, out_raw), lambda i: (i, 0)),
        out_shape=jax.ShapeDtypeStruct((B_pad, out_raw), f32),
        compiler_params=pltpu.CompilerParams(
            dimension_semantics=("parallel",),
            vmem_limit_bytes=32 * 1024 * 1024),
        cost_estimate=cost,
    )(xv, cv, ev, slab)

    out = out[:B]
    z_mean = out[:, 0:z_dim]
    z_var = out[:, z_dim:2 * z_dim]
    z = out[:, 2 * z_dim:3 * z_dim]
    x_recon = out[:, 3 * z_dim:3 * z_dim + x_dim]
    return z_mean, z_var, z, x_recon


def init_params(key, x_dim, c_dim, z_dim, enc, dec):
    """Deterministic init mimicking nn.Linear (uniform +-1/sqrt(fan_in)).

    Weights are stored pre-transposed as (fan_in, fan_out); splitting / packing for the
    kernel happens in the wrapper.
    """
    keys = iter(jax.random.split(key, 32))

    def lin(fan_in, fan_out):
        kw, kb = next(keys), next(keys)
        bound = float(1.0 / (fan_in ** 0.5))
        W = jax.random.uniform(kw, (fan_in, fan_out), jnp.float32, -bound, bound)
        b = jax.random.uniform(kb, (1, fan_out), jnp.float32, -bound, bound)
        return W, b

    p = {}
    p["w_enc0"], p["b_enc0"] = lin(x_dim + c_dim, enc[0])       # fc_enc[0]
    p["w_enc1"], p["b_enc1"] = lin(enc[0] + c_dim, enc[1])      # fc_enc[1]
    p["w_mean"], p["b_mean"] = lin(enc[1], z_dim)               # fc_mean
    p["w_var"], p["b_var"] = lin(enc[1], z_dim)                 # fc_var
    p["w_dec0"], p["b_dec0"] = lin(z_dim + c_dim, dec[0])       # fc_dec[0]
    p["w_dec1"], p["b_dec1"] = lin(dec[0] + c_dim, dec[1])      # fc_dec[1]
    p["w_logits"], p["b_logits"] = lin(dec[1], x_dim)           # fc_logits
    return p


def reference_forward(x_aug, c_s, eps_z, p):
    """Pure-JAX reference matching the PyTorch math exactly."""
    h = _leaky_relu(jnp.concatenate([x_aug, c_s], axis=1) @ p["w_enc0"] + p["b_enc0"])
    h = _leaky_relu(jnp.concatenate([h, c_s], axis=1) @ p["w_enc1"] + p["b_enc1"])
    z_mean = h @ p["w_mean"] + p["b_mean"]
    z_var = _softplus(h @ p["w_var"] + p["b_var"])
    z = z_mean + z_var * eps_z
    d = _leaky_relu(jnp.concatenate([z, c_s], axis=1) @ p["w_dec0"] + p["b_dec0"])
    d = _leaky_relu(jnp.concatenate([d, c_s], axis=1) @ p["w_dec1"] + p["b_dec1"])
    x_recon = d @ p["w_logits"] + p["b_logits"]
    return z_mean, z_var, z, x_recon


if __name__ == "__main__":
    key = jax.random.PRNGKey(0)
    # small shapes consistent with the module's forward
    N, sample_size = 2, 8
    x_dim, z_dim, c_dim = 8, 4, 2
    enc_sizes, dec_sizes = [32, 32], [32, 32]
    var = 0.1

    kp, kx, kc, knb, ke1, ke2 = jax.random.split(key, 6)
    params = init_params(kp, x_dim, c_dim, z_dim, enc_sizes, dec_sizes)

    x = jax.random.normal(kx, (N, x_dim), jnp.float32)
    c = jax.random.normal(kc, (N, c_dim), jnp.float32)
    null_basis = jax.random.normal(knb, (N, x_dim, z_dim), jnp.float32)

    # ---- forward() glue (plain JAX): repeat_interleave + tangent-space augmentation.
    # The augmentation is a tiny per-row (x_dim x z_dim) matvec; the MLP hot path lives
    # in the Pallas kernel.
    B = N * sample_size
    x_s = jnp.repeat(x, sample_size, axis=0)
    c_s = jnp.repeat(c, sample_size, axis=0)
    nulls = jnp.repeat(null_basis, sample_size, axis=0)
    eps_aug = jax.random.normal(ke1, (B, z_dim), jnp.float32) * var
    x_aug = x_s + jnp.einsum("bxz,bz->bx", nulls, eps_aug)
    eps_z = jax.random.normal(ke2, (B, z_dim), jnp.float32)  # q_z.rsample() noise

    outs = tsvae_forward_pallas(x_aug, c_s, eps_z, params)
    outs = jax.block_until_ready(outs)
    z_mean, z_var, z, x_recon = outs

    # forward() returns ((z_mean, var), (q_z, p_z), z, x, x_recon); the distribution
    # objects are fully described by (z_mean, z_var) / (0, 1), so we check the tensors.
    refs = reference_forward(x_aug, c_s, eps_z, params)
    for got, want in zip(outs, refs):
        assert jnp.allclose(got, want, atol=1e-4, rtol=1e-4), "kernel/reference mismatch"

    print("KERNEL_OK")
</pallas_src>

<mosaic_0001>
module attributes {stable_mosaic.version = 11 : i64} {
  func.func @kernel(%arg0: i32, %arg1: memref<16x8xf32, #tpu.memory_space<vmem>>, %arg2: memref<16x2xf32, #tpu.memory_space<vmem>>, %arg3: memref<16x4xf32, #tpu.memory_space<vmem>>, %arg4: memref<32x416xf32, #tpu.memory_space<vmem>>, %arg5: memref<16x20xf32, #tpu.memory_space<vmem>>) attributes {dimension_semantics = [#tpu.dimension_semantics<parallel>], iteration_bounds = array<i64: 1>, scalar_prefetch = 0 : i64, scratch_operands = 0 : i64, tpu.core_type = #tpu.core_type<tc>, window_params = [{transform_indices = @transform_0, window_bounds = array<i64: 16, 8>}, {transform_indices = @transform_1, window_bounds = array<i64: 16, 2>}, {transform_indices = @transform_2, window_bounds = array<i64: 16, 4>}, {pipeline_mode = #tpu.pipeline_mode<synchronous>, transform_indices = @transform_3, window_bounds = array<i64: 32, 416>}, {transform_indices = @transform_4, window_bounds = array<i64: 16, 20>}]} {
    %c0 = arith.constant 0 : index
    %c0_0 = arith.constant 0 : index
    %0 = vector.load %arg1[%c0, %c0_0] : memref<16x8xf32, #tpu.memory_space<vmem>>, vector<16x8xf32>
    %c0_1 = arith.constant 0 : index
    %c0_2 = arith.constant 0 : index
    %1 = vector.load %arg2[%c0_1, %c0_2] : memref<16x2xf32, #tpu.memory_space<vmem>>, vector<16x2xf32>
    %c0_3 = arith.constant 0 : index
    %c0_4 = arith.constant 0 : index
    %2 = vector.load %arg3[%c0_3, %c0_4] : memref<16x4xf32, #tpu.memory_space<vmem>>, vector<16x4xf32>
    %c0_5 = arith.constant 0 : index
    %c0_6 = arith.constant 0 : index
    %3 = vector.load %arg4[%c0_5, %c0_6] : memref<32x416xf32, #tpu.memory_space<vmem>>, vector<32x416xf32>
    %4 = vector.extract_strided_slice %3 {offsets = [0, 0], sizes = [8, 32], strides = [1, 1]} : vector<32x416xf32> to vector<8x32xf32>
    %5 = vector.extract_strided_slice %3 {offsets = [0, 32], sizes = [32, 32], strides = [1, 1]} : vector<32x416xf32> to vector<32x32xf32>
    %6 = vector.extract_strided_slice %3 {offsets = [0, 64], sizes = [2, 128], strides = [1, 1]} : vector<32x416xf32> to vector<2x128xf32>
    %7 = vector.extract_strided_slice %3 {offsets = [0, 192], sizes = [32, 8], strides = [1, 1]} : vector<32x416xf32> to vector<32x8xf32>
    %8 = vector.extract_strided_slice %3 {offsets = [0, 200], sizes = [4, 32], strides = [1, 1]} : vector<32x416xf32> to vector<4x32xf32>
    %9 = vector.extract_strided_slice %3 {offsets = [0, 232], sizes = [32, 32], strides = [1, 1]} : vector<32x416xf32> to vector<32x32xf32>
    %10 = vector.extract_strided_slice %3 {offsets = [0, 264], sizes = [32, 8], strides = [1, 1]} : vector<32x416xf32> to vector<32x8xf32>
    %11 = vector.extract_strided_slice %3 {offsets = [0, 272], sizes = [1, 144], strides = [1, 1]} : vector<32x416xf32> to vector<1x144xf32>
    %12 = vector.extract_strided_slice %11 {offsets = [0, 0], sizes = [1, 32], strides = [1, 1]} : vector<1x144xf32> to vector<1x32xf32>
    %13 = vector.extract_strided_slice %11 {offsets = [0, 32], sizes = [1, 32], strides = [1, 1]} : vector<1x144xf32> to vector<1x32xf32>
    %14 = vector.extract_strided_slice %11 {offsets = [0, 64], sizes = [1, 8], strides = [1, 1]} : vector<1x144xf32> to vector<1x8xf32>
    %15 = vector.extract_strided_slice %11 {offsets = [0, 72], sizes = [1, 32], strides = [1, 1]} : vector<1x144xf32> to vector<1x32xf32>
    %16 = vector.extract_strided_slice %11 {offsets = [0, 104], sizes = [1, 32], strides = [1, 1]} : vector<1x144xf32> to vector<1x32xf32>
    %17 = vector.extract_strided_slice %11 {offsets = [0, 136], sizes = [1, 8], strides = [1, 1]} : vector<1x144xf32> to vector<1x8xf32>
    %cst = arith.constant dense<0.000000e+00> : vector<16x128xf32>
    %18 = tpu.matmul %1, %6, %cst {dimension_numbers = #tpu.dot_dimension_numbers<[1], [0], [0], [1], [0, 0, 1, 1], [], []>} : vector<16x2xf32>, vector<2x128xf32>, vector<16x128xf32> -> vector<16x128xf32>
    %19 = vector.extract_strided_slice %18 {offsets = [0, 0], sizes = [16, 32], strides = [1, 1]} : vector<16x128xf32> to vector<16x32xf32>
    %20 = vector.extract_strided_slice %18 {offsets = [0, 32], sizes = [16, 32], strides = [1, 1]} : vector<16x128xf32> to vector<16x32xf32>
    %21 = vector.extract_strided_slice %18 {offsets = [0, 64], sizes = [16, 32], strides = [1, 1]} : vector<16x128xf32> to vector<16x32xf32>
    %22 = vector.extract_strided_slice %18 {offsets = [0, 96], sizes = [16, 32], strides = [1, 1]} : vector<16x128xf32> to vector<16x32xf32>
    %cst_7 = arith.constant dense<0.000000e+00> : vector<16x32xf32>
    %23 = tpu.matmul %0, %4, %cst_7 {dimension_numbers = #tpu.dot_dimension_numbers<[1], [0], [0], [1], [0, 0, 1, 1], [], []>} : vector<16x8xf32>, vector<8x32xf32>, vector<16x32xf32> -> vector<16x32xf32>
    %24 = arith.addf %23, %19 : vector<16x32xf32>
    %25 = vector.broadcast %12 : vector<1x32xf32> to vector<16x32xf32>
    %26 = arith.addf %24, %25 : vector<16x32xf32>
    %cst_8 = arith.constant 0.000000e+00 : f32
    %27 = vector.broadcast %cst_8 : f32 to vector<16x32xf32>
    %28 = arith.cmpf ogt, %26, %27 : vector<16x32xf32>
    %cst_9 = arith.constant 0.00999999977 : f32
    %29 = vector.broadcast %cst_9 : f32 to vector<16x32xf32>
    %30 = arith.mulf %29, %26 : vector<16x32xf32>
    %31 = arith.select %28, %26, %30 : vector<16x32xi1>, vector<16x32xf32>
    %cst_10 = arith.constant dense<0.000000e+00> : vector<16x32xf32>
    %32 = tpu.matmul %31, %5, %cst_10 {dimension_numbers = #tpu.dot_dimension_numbers<[1], [0], [0], [1], [0, 0, 1, 1], [], []>} : vector<16x32xf32>, vector<32x32xf32>, vector<16x32xf32> -> vector<16x32xf32>
    %33 = arith.addf %32, %20 : vector<16x32xf32>
    %34 = vector.broadcast %13 : vector<1x32xf32> to vector<16x32xf32>
    %35 = arith.addf %33, %34 : vector<16x32xf32>
    %cst_11 = arith.constant 0.000000e+00 : f32
    %36 = vector.broadcast %cst_11 : f32 to vector<16x32xf32>
    %37 = arith.cmpf ogt, %35, %36 : vector<16x32xf32>
    %cst_12 = arith.constant 0.00999999977 : f32
    %38 = vector.broadcast %cst_12 : f32 to vector<16x32xf32>
    %39 = arith.mulf %38, %35 : vector<16x32xf32>
    %40 = arith.select %37, %35, %39 : vector<16x32xi1>, vector<16x32xf32>
    %cst_13 = arith.constant dense<0.000000e+00> : vector<16x8xf32>
    %41 = tpu.matmul %40, %7, %cst_13 {dimension_numbers = #tpu.dot_dimension_numbers<[1], [0], [0], [1], [0, 0, 1, 1], [], []>} : vector<16x32xf32>, vector<32x8xf32>, vector<16x8xf32> -> vector<16x8xf32>
    %42 = vector.broadcast %14 : vector<1x8xf32> to vector<16x8xf32>
    %43 = arith.addf %41, %42 : vector<16x8xf32>
    %44 = vector.extract_strided_slice %43 {offsets = [0, 0], sizes = [16, 4], strides = [1, 1]} : vector<16x8xf32> to vector<16x4xf32>
    %45 = vector.extract_strided_slice %43 {offsets = [0, 4], sizes = [16, 4], strides = [1, 1]} : vector<16x8xf32> to vector<16x4xf32>
    %cst_14 = arith.constant 2.000000e+01 : f32
    %46 = vector.broadcast %cst_14 : f32 to vector<16x4xf32>
    %47 = arith.cmpf ogt, %45, %46 : vector<16x4xf32>
    %48 = math.exp %45 : vector<16x4xf32>
    %49 = math.log1p %48 : vector<16x4xf32>
    %50 = arith.select %47, %45, %49 : vector<16x4xi1>, vector<16x4xf32>
    %51 = arith.mulf %50, %2 : vector<16x4xf32>
    %52 = arith.addf %44, %51 : vector<16x4xf32>
    %cst_15 = arith.constant dense<0.000000e+00> : vector<16x32xf32>
    %53 = tpu.matmul %52, %8, %cst_15 {dimension_numbers = #tpu.dot_dimension_numbers<[1], [0], [0], [1], [0, 0, 1, 1], [], []>} : vector<16x4xf32>, vector<4x32xf32>, vector<16x32xf32> -> vector<16x32xf32>
    %54 = arith.addf %53, %21 : vector<16x32xf32>
    %55 = vector.broadcast %15 : vector<1x32xf32> to vector<16x32xf32>
    %56 = arith.addf %54, %55 : vector<16x32xf32>
    %cst_16 = arith.constant 0.000000e+00 : f32
    %57 = vector.broadcast %cst_16 : f32 to vector<16x32xf32>
    %58 = arith.cmpf ogt, %56, %57 : vector<16x32xf32>
    %cst_17 = arith.constant 0.00999999977 : f32
    %59 = vector.broadcast %cst_17 : f32 to vector<16x32xf32>
    %60 = arith.mulf %59, %56 : vector<16x32xf32>
    %61 = arith.select %58, %56, %60 : vector<16x32xi1>, vector<16x32xf32>
    %cst_18 = arith.constant dense<0.000000e+00> : vector<16x32xf32>
    %62 = tpu.matmul %61, %9, %cst_18 {dimension_numbers = #tpu.dot_dimension_numbers<[1], [0], [0], [1], [0, 0, 1, 1], [], []>} : vector<16x32xf32>, vector<32x32xf32>, vector<16x32xf32> -> vector<16x32xf32>
    %63 = arith.addf %62, %22 : vector<16x32xf32>
    %64 = vector.broadcast %16 : vector<1x32xf32> to vector<16x32xf32>
    %65 = arith.addf %63, %64 : vector<16x32xf32>
    %cst_19 = arith.constant 0.000000e+00 : f32
    %66 = vector.broadcast %cst_19 : f32 to vector<16x32xf32>
    %67 = arith.cmpf ogt, %65, %66 : vector<16x32xf32>
    %cst_20 = arith.constant 0.00999999977 : f32
    %68 = vector.broadcast %cst_20 : f32 to vector<16x32xf32>
    %69 = arith.mulf %68, %65 : vector<16x32xf32>
    %70 = arith.select %67, %65, %69 : vector<16x32xi1>, vector<16x32xf32>
    %cst_21 = arith.constant dense<0.000000e+00> : vector<16x8xf32>
    %71 = tpu.matmul %70, %10, %cst_21 {dimension_numbers = #tpu.dot_dimension_numbers<[1], [0], [0], [1], [0, 0, 1, 1], [], []>} : vector<16x32xf32>, vector<32x8xf32>, vector<16x8xf32> -> vector<16x8xf32>
    %72 = vector.broadcast %17 : vector<1x8xf32> to vector<16x8xf32>
    %73 = arith.addf %71, %72 : vector<16x8xf32>
    %74 = tpu.concatenate %44, %50, %52, %73 in 1 : vector<16x4xf32>, vector<16x4xf32>, vector<16x4xf32>, vector<16x8xf32> -> vector<16x20xf32>
    %c0_22 = arith.constant 0 : index
    %c0_23 = arith.constant 0 : index
    %75 = vector.load %arg5[%c0_22, %c0_23] : memref<16x20xf32, #tpu.memory_space<vmem>>, vector<16x20xf32>
    tpu.vector_store %arg5[%c0_22, %c0_23], %74 {strides = array<i32>} : memref<16x20xf32, #tpu.memory_space<vmem>>, vector<16x20xf32>,
    return
  }
  func.func @transform_0(%arg0: i32) -> (i32, i32) {
    %c0_i32 = arith.constant 0 : i32
    %c0_i32_0 = arith.constant 0 : i32
    return %arg0, %c0_i32 : i32, i32
  }
  func.func @transform_1(%arg0: i32) -> (i32, i32) {
    %c0_i32 = arith.constant 0 : i32
    %c0_i32_0 = arith.constant 0 : i32
    return %arg0, %c0_i32 : i32, i32
  }
  func.func @transform_2(%arg0: i32) -> (i32, i32) {
    %c0_i32 = arith.constant 0 : i32
    %c0_i32_0 = arith.constant 0 : i32
    return %arg0, %c0_i32 : i32, i32
  }
  func.func @transform_3(%arg0: i32) -> (i32, i32) {
    %c0_i32 = arith.constant 0 : i32
    %c0_i32_0 = arith.constant 0 : i32
    %c0_i32_1 = arith.constant 0 : i32
    return %c0_i32, %c0_i32_0 : i32, i32
  }
  func.func @transform_4(%arg0: i32) -> (i32, i32) {
    %c0_i32 = arith.constant 0 : i32
    %c0_i32_0 = arith.constant 0 : i32
    return %arg0, %c0_i32 : i32, i32
  }
}

</mosaic_0001>

<llo_original>
// kernel: tpu_custom_call.1
$region0: #{tpu_custom_call.1}
  #allocation0 [shape = 'u32[]', space=smem, size = 0x4, offset = 0x4, fixed_abs, tag = 'smem constant byte address 0x4 - core index']
  #allocation1 [shape = 'u32[144,128]{1,0:T(1,128)}', space=vmem, size = 0x12000, scoped, tag = 'internal scratch']
  %s0 = inlined_call_operand.vmem [shape: f32[16,8], index: 0, kind: input, shape index: {}]
  %s1 = inlined_call_operand.vmem [shape: f32[16,2], index: 1, kind: input, shape index: {}]
  %s2 = inlined_call_operand.vmem [shape: f32[16,4], index: 2, kind: input, shape index: {}]
  %s3 = inlined_call_operand.hbm [shape: f32[32,416], index: 3, kind: input, shape index: {}]
  %s4 = inlined_call_operand.hbm [shape: f32[16,20], index: 4, kind: output, shape index: {}]
  %s5 = sld [smem:[#allocation0]]
  $region30: #{tpu_custom_call.1} parent=0
    _
  %s7 = ssub.s32 1, %s5
  %s8 = scalar_select 0, %s7, %s5
  $region1: #{tpu_custom_call.1} parent=0
    #allocation2 [shape = 'u8[65536]{0}', space=vmem, size = 0x10000, scoped, tag = 'input window, operand 3, single buffered']
    #allocation3 [shape = 's32[1]{0}', space=sflag, size = 0x4, scoped, tag = 'scoped memory for tpu_custom_call.1']
    #allocation4 [shape = 's32[1]{0}', space=sflag, size = 0x4, scoped, tag = 'scoped memory for tpu_custom_call.1']
    #allocation5 [shape = 'u8[8192]{0}', space=vmem, size = 0x2000, scoped, tag = 'output window, operand 0, single buffered']
    %9 = vsyncpa [#allocation3], 0
    %10 = vsyncpa [#allocation4], 0
    // Predicated region
    $region2: #{tpu_custom_call.1} parent=1 // pred_check
      _
    $region3: #{tpu_custom_call.1} parent=1 // pred_check_branch
      %12 = sbr.rel (0) target = $region5
    $region4: #{tpu_custom_call.1} parent=1 // pred_region
      _
    $region5: #{tpu_custom_call.1} parent=1 // pred_fallthru
      _
    // Predicated region
    $region6: #{tpu_custom_call.1} parent=1 // pred_check
      _
    $region7: #{tpu_custom_call.1} parent=1 // pred_check_branch
      %14 = sbr.rel (0) target = $region9
    $region8: #{tpu_custom_call.1} parent=1 // pred_region
      _
    $region9: #{tpu_custom_call.1} parent=1 // pred_fallthru
      _
    // Predicated region
    $region10: #{tpu_custom_call.1} parent=1 // pred_check
      _
    $region11: #{tpu_custom_call.1} parent=1 // pred_check_branch
      %16 = sbr.rel (0) target = $region13
    $region12: #{tpu_custom_call.1} parent=1 // pred_region
      _
    $region13: #{tpu_custom_call.1} parent=1 // pred_fallthru
      _
    // Predicated region
    $region14: #{tpu_custom_call.1} parent=1 // pred_check
      _
    $region15: #{tpu_custom_call.1} parent=1 // pred_check_branch
      %18 = sbr.rel (0) target = $region17
    $region16: #{tpu_custom_call.1} parent=1 // pred_region
      %s20 = ssub.s32 2048, 2048
      %21 = vsyncadd [#allocation3], %s20
      %s22 = sshll.u32 [#allocation2], 4
      %s23 = int_to_ptr.vmem [resolvable:$true] %s22
      %28 = dma.hbm_to_vmem [thread:$0]  %s3, 2048, %s23, [#allocation3], 512, 512, 32
    $region17: #{tpu_custom_call.1} parent=1 // pred_fallthru
      _
    // Predicated region
    $region18: #{tpu_custom_call.1} parent=1 // pred_check
      _
    $region19: #{tpu_custom_call.1} parent=1 // pred_check_branch
      %30 = sbr.rel (0) target = $region21
    $region20: #{tpu_custom_call.1} parent=1 // pred_region
      %31 = dma.done [#allocation3], 2048
    $region21: #{tpu_custom_call.1} parent=1 // pred_fallthru
      _
    %v32 = vld [vmem:[%s0] sm:$0xff]
    %v33 = vld [vmem:[%s0 + $0x8] sm:$0xff]
    %v34 = vld [vmem:[%s1] sm:$0xff]
    %v35 = vld [vmem:[%s1 + $0x8] sm:$0xff]
    %v36 = vld [vmem:[%s2] sm:$0xff]
    %v37 = vld [vmem:[%s2 + $0x8] sm:$0xff]
    %v38 = vld [vmem:[#allocation2] sm:$0xff]
    %v39 = vld [vmem:[#allocation2 + $0x8] sm:$0xff]
    %v40 = vld [vmem:[#allocation2 + $0x10] sm:$0xff]
    %v41 = vld [vmem:[#allocation2 + $0x18] sm:$0xff]
    %v42 = vld [vmem:[#allocation2 + $0x20] sm:$0xff]
    %v43 = vld [vmem:[#allocation2 + $0x28] sm:$0xff]
    %v44 = vld [vmem:[#allocation2 + $0x30] sm:$0xff]
    %v45 = vld [vmem:[#allocation2 + $0x40] sm:$0xff]
    %v46 = vld [vmem:[#allocation2 + $0x48] sm:$0xff]
    %v47 = vld [vmem:[#allocation2 + $0x50] sm:$0xff]
    %v48 = vld [vmem:[#allocation2 + $0x60] sm:$0xff]
    %v49 = vld [vmem:[#allocation2 + $0x68] sm:$0xff]
    %v50 = vld [vmem:[#allocation2 + $0x70] sm:$0xff]
    %53 = vrot.lane.b32.xlu0 %v38, 64
    %v54 = vpop.permute.xlu0 %53
    %55 = vrot.lane.b32.xlu0 %v39, 64
    %v56 = vpop.permute.xlu0 %55
    %vm57 = vcmask 523264
    %v58 = vsel %vm57, %v54, %v56
    %vm59 = vcmask 15360
    %v61 = vsel %vm59, %v34, 0
    %v64 = vsel %vm59, %v35, 0
    %vm66 = vcmask 1041408
    %v67 = vsel %vm66, %v58, 0
    %69 = vmatprep.subr.mxu0 0.0
    %70 = vmatpush1.msra.mxu0 %v67
    %71 = vmatprep.subr.mxu0 0.0
    %72 = vmatpush1.msra.mxu0 0.0
    %73 = vmatprep.subr.mxu0 0.0
    %74 = vmatpush1.msra.mxu0 0.0
    %75 = vmatprep.subr.mxu0 0.0
    %76 = vmatpush1.msra.mxu0 0.0
    %77 = vmatprep.subr.mxu0 0.0
    %78 = vmatpush1.msra.mxu0 0.0
    %79 = vmatprep.subr.mxu0 0.0
    %80 = vmatpush1.msra.mxu0 0.0
    %81 = vmatprep.subr.mxu0 0.0
    %82 = vmatpush1.msra.mxu0 0.0
    %83 = vmatprep.subr.mxu0 0.0
    %84 = vmatpush1.msra.mxu0 0.0
    %85 = vmatprep.subr.mxu0 0.0
    %86 = vmatpush1.msra.mxu0 0.0
    %87 = vmatprep.subr.mxu0 0.0
    %88 = vmatpush1.msra.mxu0 0.0
    %89 = vmatprep.subr.mxu0 0.0
    %90 = vmatpush1.msra.mxu0 0.0
    %91 = vmatprep.subr.mxu0 0.0
    %92 = vmatpush1.msra.mxu0 0.0
    %93 = vmatprep.subr.mxu0 0.0
    %94 = vmatpush1.msra.mxu0 0.0
    %95 = vmatprep.subr.mxu0 0.0
    %96 = vmatpush1.msra.mxu0 0.0
    %97 = vmatprep.subr.mxu0 0.0
    %98 = vmatpush1.msra.mxu0 0.0
    %99 = vmatprep.subr.mxu0 0.0
    %100 = vmatpush1.msra.mxu0 0.0
    %101 = vmatprep.subr.mxu0 0.0
    %102 = vmatpush1.msra.mxu0 0.0
    %103 = vmatprep.subr.mxu0 0.0
    %104 = vmatpush1.msra.mxu0 0.0
    %105 = vmatprep.subr.mxu0 0.0
    %106 = vmatpush1.msra.mxu0 0.0
    %107 = vmatprep.subr.mxu0 0.0
    %108 = vmatpush1.msra.mxu0 0.0
    %109 = vmatprep.subr.mxu0 0.0
    %110 = vmatpush1.msra.mxu0 0.0
    %111 = vmatprep.subr.mxu0 0.0
    %112 = vmatpush1.msra.mxu0 0.0
    %113 = vmatprep.subr.mxu0 0.0
    %114 = vmatpush1.msra.mxu0 0.0
    %115 = vmatprep.subr.mxu0 0.0
    %116 = vmatpush1.msra.mxu0 0.0
    %117 = vmatprep.subr.mxu0 0.0
    %118 = vmatpush1.msra.mxu0 0.0
    %119 = vmatprep.subr.mxu0 0.0
    %120 = vmatpush1.msra.mxu0 0.0
    %121 = vmatprep.subr.mxu0 0.0
    %122 = vmatpush1.msra.mxu0 0.0
    %123 = vmatprep.subr.mxu0 0.0
    %124 = vmatpush1.msra.mxu0 0.0
    %125 = vmatprep.subr.mxu0 0.0
    %126 = vmatpush1.msra.mxu0 0.0
    %127 = vmatprep.subr.mxu0 0.0
    %128 = vmatpush1.msra.mxu0 0.0
    %129 = vmatprep.subr.mxu0 0.0
    %130 = vmatpush1.msra.mxu0 0.0
    %131 = vmatprep.subr.mxu0 0.0
    %132 = vmatpush1.msra.mxu0 0.0
    %133 = vmatprep.mubr.f32.mxu0 0.0
    %134 = vmatmul.mubr.f32.gmra.mrb[0].mxu0 %v61
    %v135 = vpop.f32.mrb[0].mxu0
    %v136 = vadd.f32 0.0, %v135
    %v137 = vpop.f32.mrb[0].mxu0
    %138 = vmatprep.mubr.f32.mxu0 0.0
    %139 = vmatmul.mubr.f32.gmra.mrb[0].mxu0 %v64
    %v140 = vpop.f32.mrb[0].mxu0
    %v141 = vadd.f32 0.0, %v140
    %v142 = vpop.f32.mrb[0].mxu0
    %143 = vdwg.mxu0
    %vm144 = vcmask 64512
    %v146 = vsel %vm144, %v32, 0
    %v149 = vsel %vm144, %v33, 0
    %151 = vmatprep.subr.mxu0 0.0
    %152 = vmatpush1.msra.mxu0 %v38
    %153 = vmatprep.subr.mxu0 0.0
    %154 = vmatpush1.msra.mxu0 0.0
    %155 = vmatprep.subr.mxu0 0.0
    %156 = vmatpush1.msra.mxu0 0.0
    %157 = vmatprep.subr.mxu0 0.0
    %158 = vmatpush1.msra.mxu0 0.0
    %159 = vmatprep.subr.mxu0 0.0
    %160 = vmatpush1.msra.mxu0 0.0
    %161 = vmatprep.subr.mxu0 0.0
    %162 = vmatpush1.msra.mxu0 0.0
    %163 = vmatprep.subr.mxu0 0.0
    %164 = vmatpush1.msra.mxu0 0.0
    %165 = vmatprep.subr.mxu0 0.0
    %166 = vmatpush1.msra.mxu0 0.0
    %167 = vmatprep.subr.mxu0 0.0
    %168 = vmatpush1.msra.mxu0 0.0
    %169 = vmatprep.subr.mxu0 0.0
    %170 = vmatpush1.msra.mxu0 0.0
    %171 = vmatprep.subr.mxu0 0.0
    %172 = vmatpush1.msra.mxu0 0.0
    %173 = vmatprep.subr.mxu0 0.0
    %174 = vmatpush1.msra.mxu0 0.0
    %175 = vmatprep.subr.mxu0 0.0
    %176 = vmatpush1.msra.mxu0 0.0
    %177 = vmatprep.subr.mxu0 0.0
    %178 = vmatpush1.msra.mxu0 0.0
    %179 = vmatprep.subr.mxu0 0.0
    %180 = vmatpush1.msra.mxu0 0.0
    %181 = vmatprep.subr.mxu0 0.0
    %182 = vmatpush1.msra.mxu0 0.0
    %183 = vmatprep.subr.mxu0 0.0
    %184 = vmatpush1.msra.mxu0 0.0
    %185 = vmatprep.subr.mxu0 0.0
    %186 = vmatpush1.msra.mxu0 0.0
    %187 = vmatprep.subr.mxu0 0.0
    %188 = vmatpush1.msra.mxu0 0.0
    %189 = vmatprep.subr.mxu0 0.0
    %190 = vmatpush1.msra.mxu0 0.0
    %191 = vmatprep.subr.mxu0 0.0
    %192 = vmatpush1.msra.mxu0 0.0
    %193 = vmatprep.subr.mxu0 0.0
    %194 = vmatpush1.msra.mxu0 0.0
    %195 = vmatprep.subr.mxu0 0.0
    %196 = vmatpush1.msra.mxu0 0.0
    %197 = vmatprep.subr.mxu0 0.0
    %198 = vmatpush1.msra.mxu0 0.0
    %199 = vmatprep.subr.mxu0 0.0
    %200 = vmatpush1.msra.mxu0 0.0
    %201 = vmatprep.subr.mxu0 0.0
    %202 = vmatpush1.msra.mxu0 0.0
    %203 = vmatprep.subr.mxu0 0.0
    %204 = vmatpush1.msra.mxu0 0.0
    %205 = vmatprep.subr.mxu0 0.0
    %206 = vmatpush1.msra.mxu0 0.0
    %207 = vmatprep.subr.mxu0 0.0
    %208 = vmatpush1.msra.mxu0 0.0
    %209 = vmatprep.subr.mxu0 0.0
    %210 = vmatpush1.msra.mxu0 0.0
    %211 = vmatprep.subr.mxu0 0.0
    %212 = vmatpush1.msra.mxu0 0.0
    %213 = vmatprep.subr.mxu0 0.0
    %214 = vmatpush1.msra.mxu0 0.0
    %215 = vmatprep.mubr.f32.mxu0 0.0
    %216 = vmatmul.mubr.f32.gmra.mrb[0].mxu0 %v146
    %v217 = vpop.f32.mrb[0].mxu0
    %v218 = vadd.f32 %v136, %v217
    %v219 = vpop.f32.mrb[0].mxu0
    %220 = vmatprep.mubr.f32.mxu0 0.0
    %221 = vmatmul.mubr.f32.gmra.mrb[0].mxu0 %v149
    %v222 = vpop.f32.mrb[0].mxu0
    %v223 = vadd.f32 %v141, %v222
    %v224 = vpop.f32.mrb[0].mxu0
    %225 = vdwg.mxu0
    %v226 = vlaneseq
    %v227 = vshrl.u32 %v226, 7
    %v228 = vsub.s32 0, %v227
    %v229 = vrot.slane %v40, %v228
    %231 = vrot.lane.b32.xlu0 %v229, 112
    %v232 = vpop.permute.xlu0 %231
    %v234 = vadd.f32 %v218, %v232
    %v235 = vadd.f32 %v223, %v232
    %vm236 = vcmp.gt.f32.partialorder %v234, 0.0
    %vm237 = vcmp.gt.f32.partialorder %v235, 0.0
    %v238 = vmul.f32 %v234, 0.01
    %v239 = vmul.f32 %v235, 0.01
    %v240 = vsel %vm236, %v234, %v238
    %v241 = vsel %vm237, %v235, %v239
    %245 = vrot.lane.b32.xlu0 %v38, 96
    %v246 = vpop.permute.xlu0 %245
    %247 = vrot.lane.b32.xlu0 %v42, 96
    %v248 = vpop.permute.xlu0 %247
    %249 = vrot.lane.b32.xlu0 %v45, 96
    %v250 = vpop.permute.xlu0 %249
    %251 = vrot.lane.b32.xlu0 %v48, 96
    %v252 = vpop.permute.xlu0 %251
    %259 = vrot.lane.b32.xlu0 %v136, 96
    %v260 = vpop.permute.xlu0 %259
    %261 = vrot.lane.b32.xlu0 %v141, 96
    %v262 = vpop.permute.xlu0 %261
    %vm265 = vcmask 261120
    %v267 = vsel %vm265, %v240, 0
    %v270 = vsel %vm265, %v241, 0
    %272 = vmatprep.subr.mxu0 0.0
    %273 = vmatpush1.msra.mxu0 %v246
    %274 = vmatprep.subr.mxu0 0.0
    %275 = vmatpush1.msra.mxu0 %v248
    %276 = vmatprep.subr.mxu0 0.0
    %277 = vmatpush1.msra.mxu0 %v250
    %278 = vmatprep.subr.mxu0 0.0
    %279 = vmatpush1.msra.mxu0 %v252
    %280 = vmatprep.subr.mxu0 0.0
    %281 = vmatpush1.msra.mxu0 0.0
    %282 = vmatprep.subr.mxu0 0.0
    %283 = vmatpush1.msra.mxu0 0.0
    %284 = vmatprep.subr.mxu0 0.0
    %285 = vmatpush1.msra.mxu0 0.0
    %286 = vmatprep.subr.mxu0 0.0
    %287 = vmatpush1.msra.mxu0 0.0
    %288 = vmatprep.subr.mxu0 0.0
    %289 = vmatpush1.msra.mxu0 0.0
    %290 = vmatprep.subr.mxu0 0.0
    %291 = vmatpush1.msra.mxu0 0.0
    %292 = vmatprep.subr.mxu0 0.0
    %293 = vmatpush1.msra.mxu0 0.0
    %294 = vmatprep.subr.mxu0 0.0
    %295 = vmatpush1.msra.mxu0 0.0
    %296 = vmatprep.subr.mxu0 0.0
    %297 = vmatpush1.msra.mxu0 0.0
    %298 = vmatprep.subr.mxu0 0.0
    %299 = vmatpush1.msra.mxu0 0.0
    %300 = vmatprep.subr.mxu0 0.0
    %301 = vmatpush1.msra.mxu0 0.0
    %302 = vmatprep.subr.mxu0 0.0
    %303 = vmatpush1.msra.mxu0 0.0
    %304 = vmatprep.subr.mxu0 0.0
    %305 = vmatpush1.msra.mxu0 0.0
    %306 = vmatprep.subr.mxu0 0.0
    %307 = vmatpush1.msra.mxu0 0.0
    %308 = vmatprep.subr.mxu0 0.0
    %309 = vmatpush1.msra.mxu0 0.0
    %310 = vmatprep.subr.mxu0 0.0
    %311 = vmatpush1.msra.mxu0 0.0
    %312 = vmatprep.subr.mxu0 0.0
    %313 = vmatpush1.msra.mxu0 0.0
    %314 = vmatprep.subr.mxu0 0.0
    %315 = vmatpush1.msra.mxu0 0.0
    %316 = vmatprep.subr.mxu0 0.0
    %317 = vmatpush1.msra.mxu0 0.0
    %318 = vmatprep.subr.mxu0 0.0
    %319 = vmatpush1.msra.mxu0 0.0
    %320 = vmatprep.subr.mxu0 0.0
    %321 = vmatpush1.msra.mxu0 0.0
    %322 = vmatprep.subr.mxu0 0.0
    %323 = vmatpush1.msra.mxu0 0.0
    %324 = vmatprep.subr.mxu0 0.0
    %325 = vmatpush1.msra.mxu0 0.0
    %326 = vmatprep.subr.mxu0 0.0
    %327 = vmatpush1.msra.mxu0 0.0
    %328 = vmatprep.subr.mxu0 0.0
    %329 = vmatpush1.msra.mxu0 0.0
    %330 = vmatprep.subr.mxu0 0.0
    %331 = vmatpush1.msra.mxu0 0.0
    %332 = vmatprep.subr.mxu0 0.0
    %333 = vmatpush1.msra.mxu0 0.0
    %334 = vmatprep.subr.mxu0 0.0
    %335 = vmatpush1.msra.mxu0 0.0
    %336 = vmatprep.mubr.f32.mxu0 0.0
    %337 = vmatmul.mubr.f32.gmra.mrb[0].mxu0 %v267
    %v338 = vpop.f32.mrb[0].mxu0
    %v339 = vadd.f32 %v260, %v338
    %v340 = vpop.f32.mrb[0].mxu0
    %341 = vmatprep.mubr.f32.mxu0 0.0
    %342 = vmatmul.mubr.f32.gmra.mrb[0].mxu0 %v270
    %v343 = vpop.f32.mrb[0].mxu0
    %v344 = vadd.f32 %v262, %v343
    %v345 = vpop.f32.mrb[0].mxu0
    %346 = vdwg.mxu0
    %347 = vrot.lane.b32.xlu0 %v229, 80
    %v348 = vpop.permute.xlu0 %347
    %v350 = vadd.f32 %v339, %v348
    %v351 = vadd.f32 %v344, %v348
    %vm352 = vcmp.gt.f32.partialorder %v350, 0.0
    %vm353 = vcmp.gt.f32.partialorder %v351, 0.0
    %v354 = vmul.f32 %v350, 0.01
    %v355 = vmul.f32 %v351, 0.01
    %v356 = vsel %vm352, %v350, %v354
    %v357 = vsel %vm353, %v351, %v355
    %361 = vrot.lane.b32.xlu0 %v43, 64
    %v362 = vpop.permute.xlu0 %361
    %363 = vrot.lane.b32.xlu0 %v46, 64
    %v364 = vpop.permute.xlu0 %363
    %365 = vrot.lane.b32.xlu0 %v49, 64
    %v366 = vpop.permute.xlu0 %365
    %371 = vrot.lane.b32.xlu0 %v229, 48
    %v372 = vpop.permute.xlu0 %371
    %v375 = vsel %vm265, %v356, 0
    %v378 = vsel %vm265, %v357, 0
    %380 = vmatprep.subr.mxu0 0.0
    %381 = vmatpush1.msra.mxu0 %v56
    %382 = vmatprep.subr.mxu0 0.0
    %383 = vmatpush1.msra.mxu0 %v362
    %384 = vmatprep.subr.mxu0 0.0
    %385 = vmatpush1.msra.mxu0 %v364
    %386 = vmatprep.subr.mxu0 0.0
    %387 = vmatpush1.msra.mxu0 %v366
    %388 = vmatprep.subr.mxu0 0.0
    %389 = vmatpush1.msra.mxu0 0.0
    %390 = vmatprep.subr.mxu0 0.0
    %391 = vmatpush1.msra.mxu0 0.0
    %392 = vmatprep.subr.mxu0 0.0
    %393 = vmatpush1.msra.mxu0 0.0
    %394 = vmatprep.subr.mxu0 0.0
    %395 = vmatpush1.msra.mxu0 0.0
    %396 = vmatprep.subr.mxu0 0.0
    %397 = vmatpush1.msra.mxu0 0.0
    %398 = vmatprep.subr.mxu0 0.0
    %399 = vmatpush1.msra.mxu0 0.0
    %400 = vmatprep.subr.mxu0 0.0
    %401 = vmatpush1.msra.mxu0 0.0
    %402 = vmatprep.subr.mxu0 0.0
    %403 = vmatpush1.msra.mxu0 0.0
    %404 = vmatprep.subr.mxu0 0.0
    %405 = vmatpush1.msra.mxu0 0.0
    %406 = vmatprep.subr.mxu0 0.0
    %407 = vmatpush1.msra.mxu0 0.0
    %408 = vmatprep.subr.mxu0 0.0
    %409 = vmatpush1.msra.mxu0 0.0
    %410 = vmatprep.subr.mxu0 0.0
    %411 = vmatpush1.msra.mxu0 0.0
    %412 = vmatprep.subr.mxu0 0.0
    %413 = vmatpush1.msra.mxu0 0.0
    %414 = vmatprep.subr.mxu0 0.0
    %415 = vmatpush1.msra.mxu0 0.0
    %416 = vmatprep.subr.mxu0 0.0
    %417 = vmatpush1.msra.mxu0 0.0
    %418 = vmatprep.subr.mxu0 0.0
    %419 = vmatpush1.msra.mxu0 0.0
    %420 = vmatprep.subr.mxu0 0.0
    %421 = vmatpush1.msra.mxu0 0.0
    %422 = vmatprep.subr.mxu0 0.0
    %423 = vmatpush1.msra.mxu0 0.0
    %424 = vmatprep.subr.mxu0 0.0
    %425 = vmatpush1.msra.mxu0 0.0
    %426 = vmatprep.subr.mxu0 0.0
    %427 = vmatpush1.msra.mxu0 0.0
    %428 = vmatprep.subr.mxu0 0.0
    %429 = vmatpush1.msra.mxu0 0.0
    %430 = vmatprep.subr.mxu0 0.0
    %431 = vmatpush1.msra.mxu0 0.0
    %432 = vmatprep.subr.mxu0 0.0
    %433 = vmatpush1.msra.mxu0 0.0
    %434 = vmatprep.subr.mxu0 0.0
    %435 = vmatpush1.msra.mxu0 0.0
    %436 = vmatprep.subr.mxu0 0.0
    %437 = vmatpush1.msra.mxu0 0.0
    %438 = vmatprep.subr.mxu0 0.0
    %439 = vmatpush1.msra.mxu0 0.0
    %440 = vmatprep.subr.mxu0 0.0
    %441 = vmatpush1.msra.mxu0 0.0
    %442 = vmatprep.subr.mxu0 0.0
    %443 = vmatpush1.msra.mxu0 0.0
    %444 = vmatprep.mubr.f32.mxu0 0.0
    %445 = vmatmul.mubr.f32.gmra.mrb[0].mxu0 %v375
    %v446 = vpop.f32.mrb[0].mxu0
    %v447 = vadd.f32 %v372, %v446
    %v448 = vpop.f32.mrb[0].mxu0
    %449 = vmatprep.mubr.f32.mxu0 0.0
    %450 = vmatmul.mubr.f32.gmra.mrb[0].mxu0 %v378
    %v451 = vpop.f32.mrb[0].mxu0
    %v452 = vadd.f32 %v372, %v451
    %v453 = vpop.f32.mrb[0].mxu0
    %454 = vdwg.mxu0
    %vm455 = vcmp.gt.f32.partialorder %v447, 20.0
    %vm456 = vcmp.gt.f32.partialorder %v452, 20.0
    %v457 = vmul.f32 %v447, 1.442695
    %v458 = vpow.pop %v457
    %v459 = vmul.f32 %v452, 1.442695
    %v460 = vpow.pop %v459
    %v461 = vadd.f32 %v458, 1.0
    %v462 = vlog2.pop %v461
    %v463 = vmul.f32 %v462, 0.6931472
    %v464 = vmul.f32 -0.5, %v458
    %v465 = vadd.f32 %v464, 1.0
    %v466 = vmul.f32 %v465, %v458
    %v467 = vand.u32 2147483647, %v458
    %vm468 = vcmp.lt.f32.partialorder %v467, 0.0004427343
    %v469 = vsel %vm468, %v466, %v463
    %v470 = vadd.f32 %v460, 1.0
    %v471 = vlog2.pop %v470
    %v472 = vmul.f32 %v471, 0.6931472
    %v473 = vmul.f32 -0.5, %v460
    %v474 = vadd.f32 %v473, 1.0
    %v475 = vmul.f32 %v474, %v460
    %v476 = vand.u32 2147483647, %v460
    %vm477 = vcmp.lt.f32.partialorder %v476, 0.0004427343
    %v478 = vsel %vm477, %v475, %v472
    %v479 = vsel %vm455, %v447, %v469
    %v480 = vsel %vm456, %v452, %v478
    %483 = vrot.lane.b32.xlu0 %v36, 4
    %v484 = vpop.permute.xlu0 %483
    %485 = vrot.lane.b32.xlu0 %v37, 4
    %v486 = vpop.permute.xlu0 %485
    %v489 = vmul.f32 %v479, %v484
    %v490 = vmul.f32 %v480, %v486
    %493 = vrot.lane.b32.xlu0 %v489, 124
    %v494 = vpop.permute.xlu0 %493
    %495 = vrot.lane.b32.xlu0 %v490, 124
    %v496 = vpop.permute.xlu0 %495
    %v499 = vadd.f32 %v447, %v494
    %v500 = vadd.f32 %v452, %v496
    %501 = vrot.lane.b32.xlu0 %v39, 56
    %v502 = vpop.permute.xlu0 %501
    %503 = vrot.lane.b32.xlu0 %v136, 64
    %v504 = vpop.permute.xlu0 %503
    %505 = vrot.lane.b32.xlu0 %v141, 64
    %v506 = vpop.permute.xlu0 %505
    %vm509 = vcmask 31744
    %v511 = vsel %vm509, %v499, 0
    %v514 = vsel %vm509, %v500, 0
    %vm516 = vcmask 1043456
    %v517 = vsel %vm516, %v502, 0
    %519 = vmatprep.subr.mxu0 0.0
    %520 = vmatpush1.msra.mxu0 %v517
    %521 = vmatprep.subr.mxu0 0.0
    %522 = vmatpush1.msra.mxu0 0.0
    %523 = vmatprep.subr.mxu0 0.0
    %524 = vmatpush1.msra.mxu0 0.0
    %525 = vmatprep.subr.mxu0 0.0
    %526 = vmatpush1.msra.mxu0 0.0
    %527 = vmatprep.subr.mxu0 0.0
    %528 = vmatpush1.msra.mxu0 0.0
    %529 = vmatprep.subr.mxu0 0.0
    %530 = vmatpush1.msra.mxu0 0.0
    %531 = vmatprep.subr.mxu0 0.0
    %532 = vmatpush1.msra.mxu0 0.0
    %533 = vmatprep.subr.mxu0 0.0
    %534 = vmatpush1.msra.mxu0 0.0
    %535 = vmatprep.subr.mxu0 0.0
    %536 = vmatpush1.msra.mxu0 0.0
    %537 = vmatprep.subr.mxu0 0.0
    %538 = vmatpush1.msra.mxu0 0.0
    %539 = vmatprep.subr.mxu0 0.0
    %540 = vmatpush1.msra.mxu0 0.0
    %541 = vmatprep.subr.mxu0 0.0
    %542 = vmatpush1.msra.mxu0 0.0
    %543 = vmatprep.subr.mxu0 0.0
    %544 = vmatpush1.msra.mxu0 0.0
    %545 = vmatprep.subr.mxu0 0.0
    %546 = vmatpush1.msra.mxu0 0.0
    %547 = vmatprep.subr.mxu0 0.0
    %548 = vmatpush1.msra.mxu0 0.0
    %549 = vmatprep.subr.mxu0 0.0
    %550 = vmatpush1.msra.mxu0 0.0
    %551 = vmatprep.subr.mxu0 0.0
    %552 = vmatpush1.msra.mxu0 0.0
    %553 = vmatprep.subr.mxu0 0.0
    %554 = vmatpush1.msra.mxu0 0.0
    %555 = vmatprep.subr.mxu0 0.0
    %556 = vmatpush1.msra.mxu0 0.0
    %557 = vmatprep.subr.mxu0 0.0
    %558 = vmatpush1.msra.mxu0 0.0
    %559 = vmatprep.subr.mxu0 0.0
    %560 = vmatpush1.msra.mxu0 0.0
    %561 = vmatprep.subr.mxu0 0.0
    %562 = vmatpush1.msra.mxu0 0.0
    %563 = vmatprep.subr.mxu0 0.0
    %564 = vmatpush1.msra.mxu0 0.0
    %565 = vmatprep.subr.mxu0 0.0
    %566 = vmatpush1.msra.mxu0 0.0
    %567 = vmatprep.subr.mxu0 0.0
    %568 = vmatpush1.msra.mxu0 0.0
    %569 = vmatprep.subr.mxu0 0.0
    %570 = vmatpush1.msra.mxu0 0.0
    %571 = vmatprep.subr.mxu0 0.0
    %572 = vmatpush1.msra.mxu0 0.0
    %573 = vmatprep.subr.mxu0 0.0
    %574 = vmatpush1.msra.mxu0 0.0
    %575 = vmatprep.subr.mxu0 0.0
    %576 = vmatpush1.msra.mxu0 0.0
    %577 = vmatprep.subr.mxu0 0.0
    %578 = vmatpush1.msra.mxu0 0.0
    %579 = vmatprep.subr.mxu0 0.0
    %580 = vmatpush1.msra.mxu0 0.0
    %581 = vmatprep.subr.mxu0 0.0
    %582 = vmatpush1.msra.mxu0 0.0
    %583 = vmatprep.mubr.f32.mxu0 0.0
    %584 = vmatmul.mubr.f32.gmra.mrb[0].mxu0 %v511
    %v585 = vpop.f32.mrb[0].mxu0
    %v586 = vadd.f32 %v504, %v585
    %v587 = vpop.f32.mrb[0].mxu0
    %588 = vmatprep.mubr.f32.mxu0 0.0
    %589 = vmatmul.mubr.f32.gmra.mrb[0].mxu0 %v514
    %v590 = vpop.f32.mrb[0].mxu0
    %v591 = vadd.f32 %v506, %v590
    %v592 = vpop.f32.mrb[0].mxu0
    %593 = vdwg.mxu0
    %594 = vrot.lane.b32.xlu0 %v229, 40
    %v595 = vpop.permute.xlu0 %594
    %v597 = vadd.f32 %v586, %v595
    %v598 = vadd.f32 %v591, %v595
    %vm599 = vcmp.gt.f32.partialorder %v597, 0.0
    %vm600 = vcmp.gt.f32.partialorder %v598, 0.0
    %v601 = vmul.f32 %v597, 0.01
    %v602 = vmul.f32 %v598, 0.01
    %v603 = vsel %vm599, %v597, %v601
    %v604 = vsel %vm600, %v598, %v602
    %609 = vrot.lane.b32.xlu0 %v39, 24
    %v610 = vpop.permute.xlu0 %609
    %611 = vrot.lane.b32.xlu0 %v40, 24
    %v612 = vpop.permute.xlu0 %611
    %613 = vrot.lane.b32.xlu0 %v43, 24
    %v614 = vpop.permute.xlu0 %613
    %615 = vrot.lane.b32.xlu0 %v44, 24
    %v616 = vpop.permute.xlu0 %615
    %617 = vrot.lane.b32.xlu0 %v46, 24
    %v618 = vpop.permute.xlu0 %617
    %619 = vrot.lane.b32.xlu0 %v47, 24
    %v620 = vpop.permute.xlu0 %619
    %621 = vrot.lane.b32.xlu0 %v49, 24
    %v622 = vpop.permute.xlu0 %621
    %623 = vrot.lane.b32.xlu0 %v50, 24
    %v624 = vpop.permute.xlu0 %623
    %vm625 = vcmask 195584
    %v626 = vsel %vm625, %v610, %v612
    %v627 = vsel %vm625, %v614, %v616
    %v628 = vsel %vm625, %v618, %v620
    %v629 = vsel %vm625, %v622, %v624
    %634 = vrot.lane.b32.xlu0 %v136, 32
    %v635 = vpop.permute.xlu0 %634
    %636 = vrot.lane.b32.xlu0 %v141, 32
    %v637 = vpop.permute.xlu0 %636
    %v641 = vsel %vm265, %v603, 0
    %v644 = vsel %vm265, %v604, 0
    %646 = vmatprep.subr.mxu0 0.0
    %647 = vmatpush1.msra.mxu0 %v626
    %648 = vmatprep.subr.mxu0 0.0
    %649 = vmatpush1.msra.mxu0 %v627
    %650 = vmatprep.subr.mxu0 0.0
    %651 = vmatpush1.msra.mxu0 %v628
    %652 = vmatprep.subr.mxu0 0.0
    %653 = vmatpush1.msra.mxu0 %v629
    %654 = vmatprep.subr.mxu0 0.0
    %655 = vmatpush1.msra.mxu0 0.0
    %656 = vmatprep.subr.mxu0 0.0
    %657 = vmatpush1.msra.mxu0 0.0
    %658 = vmatprep.subr.mxu0 0.0
    %659 = vmatpush1.msra.mxu0 0.0
    %660 = vmatprep.subr.mxu0 0.0
    %661 = vmatpush1.msra.mxu0 0.0
    %662 = vmatprep.subr.mxu0 0.0
    %663 = vmatpush1.msra.mxu0 0.0
    %664 = vmatprep.subr.mxu0 0.0
    %665 = vmatpush1.msra.mxu0 0.0
    %666 = vmatprep.subr.mxu0 0.0
    %667 = vmatpush1.msra.mxu0 0.0
    %668 = vmatprep.subr.mxu0 0.0
    %669 = vmatpush1.msra.mxu0 0.0
    %670 = vmatprep.subr.mxu0 0.0
    %671 = vmatpush1.msra.mxu0 0.0
    %672 = vmatprep.subr.mxu0 0.0
    %673 = vmatpush1.msra.mxu0 0.0
    %674 = vmatprep.subr.mxu0 0.0
    %675 = vmatpush1.msra.mxu0 0.0
    %676 = vmatprep.subr.mxu0 0.0
    %677 = vmatpush1.msra.mxu0 0.0
    %678 = vmatprep.subr.mxu0 0.0
    %679 = vmatpush1.msra.mxu0 0.0
    %680 = vmatprep.subr.mxu0 0.0
    %681 = vmatpush1.msra.mxu0 0.0
    %682 = vmatprep.subr.mxu0 0.0
    %683 = vmatpush1.msra.mxu0 0.0
    %684 = vmatprep.subr.mxu0 0.0
    %685 = vmatpush1.msra.mxu0 0.0
    %686 = vmatprep.subr.mxu0 0.0
    %687 = vmatpush1.msra.mxu0 0.0
    %688 = vmatprep.subr.mxu0 0.0
    %689 = vmatpush1.msra.mxu0 0.0
    %690 = vmatprep.subr.mxu0 0.0
    %691 = vmatpush1.msra.mxu0 0.0
    %692 = vmatprep.subr.mxu0 0.0
    %693 = vmatpush1.msra.mxu0 0.0
    %694 = vmatprep.subr.mxu0 0.0
    %695 = vmatpush1.msra.mxu0 0.0
    %696 = vmatprep.subr.mxu0 0.0
    %697 = vmatpush1.msra.mxu0 0.0
    %698 = vmatprep.subr.mxu0 0.0
    %699 = vmatpush1.msra.mxu0 0.0
    %700 = vmatprep.subr.mxu0 0.0
    %701 = vmatpush1.msra.mxu0 0.0
    %702 = vmatprep.subr.mxu0 0.0
    %703 = vmatpush1.msra.mxu0 0.0
    %704 = vmatprep.subr.mxu0 0.0
    %705 = vmatpush1.msra.mxu0 0.0
    %706 = vmatprep.subr.mxu0 0.0
    %707 = vmatpush1.msra.mxu0 0.0
    %708 = vmatprep.subr.mxu0 0.0
    %709 = vmatpush1.msra.mxu0 0.0
    %710 = vmatprep.mubr.f32.mxu0 0.0
    %711 = vmatmul.mubr.f32.gmra.mrb[0].mxu0 %v641
    %v712 = vpop.f32.mrb[0].mxu0
    %v713 = vadd.f32 %v635, %v712
    %v714 = vpop.f32.mrb[0].mxu0
    %715 = vmatprep.mubr.f32.mxu0 0.0
    %716 = vmatmul.mubr.f32.gmra.mrb[0].mxu0 %v644
    %v717 = vpop.f32.mrb[0].mxu0
    %v718 = vadd.f32 %v637, %v717
    %v719 = vpop.f32.mrb[0].mxu0
    %720 = vdwg.mxu0
    %v721 = vlaneseq
    %v722 = vshrl.u32 %v721, 7
    %v723 = vsub.s32 0, %v722
    %v724 = vrot.slane %v41, %v723
    %726 = vrot.lane.b32.xlu0 %v229, 8
    %v727 = vpop.permute.xlu0 %726
    %728 = vrot.lane.b32.xlu0 %v724, 8
    %v729 = vpop.permute.xlu0 %728
    %v730 = vsel %vm144, %v727, %v729
    %v732 = vadd.f32 %v713, %v730
    %v733 = vadd.f32 %v718, %v730
    %vm734 = vcmp.gt.f32.partialorder %v732, 0.0
    %vm735 = vcmp.gt.f32.partialorder %v733, 0.0
    %v736 = vmul.f32 %v732, 0.01
    %v737 = vmul.f32 %v733, 0.01
    %v738 = vsel %vm734, %v732, %v736
    %v739 = vsel %vm735, %v733, %v737
    %740 = vrot.lane.b32.xlu0 %v40, 120
    %v741 = vpop.permute.xlu0 %740
    %742 = vrot.lane.b32.xlu0 %v44, 120
    %v743 = vpop.permute.xlu0 %742
    %744 = vrot.lane.b32.xlu0 %v47, 120
    %v745 = vpop.permute.xlu0 %744
    %746 = vrot.lane.b32.xlu0 %v50, 120
    %v747 = vpop.permute.xlu0 %746
    %752 = vrot.lane.b32.xlu0 %v724, 104
    %v753 = vpop.permute.xlu0 %752
    %v756 = vsel %vm265, %v738, 0
    %v759 = vsel %vm265, %v739, 0
    %761 = vmatprep.subr.mxu0 0.0
    %762 = vmatpush1.msra.mxu0 %v741
    %763 = vmatprep.subr.mxu0 0.0
    %764 = vmatpush1.msra.mxu0 %v743
    %765 = vmatprep.subr.mxu0 0.0
    %766 = vmatpush1.msra.mxu0 %v745
    %767 = vmatprep.subr.mxu0 0.0
    %768 = vmatpush1.msra.mxu0 %v747
    %769 = vmatprep.subr.mxu0 0.0
    %770 = vmatpush1.msra.mxu0 0.0
    %771 = vmatprep.subr.mxu0 0.0
    %772 = vmatpush1.msra.mxu0 0.0
    %773 = vmatprep.subr.mxu0 0.0
    %774 = vmatpush1.msra.mxu0 0.0
    %775 = vmatprep.subr.mxu0 0.0
    %776 = vmatpush1.msra.mxu0 0.0
    %777 = vmatprep.subr.mxu0 0.0
    %778 = vmatpush1.msra.mxu0 0.0
    %779 = vmatprep.subr.mxu0 0.0
    %780 = vmatpush1.msra.mxu0 0.0
    %781 = vmatprep.subr.mxu0 0.0
    %782 = vmatpush1.msra.mxu0 0.0
    %783 = vmatprep.subr.mxu0 0.0
    %784 = vmatpush1.msra.mxu0 0.0
    %785 = vmatprep.subr.mxu0 0.0
    %786 = vmatpush1.msra.mxu0 0.0
    %787 = vmatprep.subr.mxu0 0.0
    %788 = vmatpush1.msra.mxu0 0.0
    %789 = vmatprep.subr.mxu0 0.0
    %790 = vmatpush1.msra.mxu0 0.0
    %791 = vmatprep.subr.mxu0 0.0
    %792 = vmatpush1.msra.mxu0 0.0
    %793 = vmatprep.subr.mxu0 0.0
    %794 = vmatpush1.msra.mxu0 0.0
    %795 = vmatprep.subr.mxu0 0.0
    %796 = vmatpush1.msra.mxu0 0.0
    %797 = vmatprep.subr.mxu0 0.0
    %798 = vmatpush1.msra.mxu0 0.0
    %799 = vmatprep.subr.mxu0 0.0
    %800 = vmatpush1.msra.mxu0 0.0
    %801 = vmatprep.subr.mxu0 0.0
    %802 = vmatpush1.msra.mxu0 0.0
    %803 = vmatprep.subr.mxu0 0.0
    %804 = vmatpush1.msra.mxu0 0.0
    %805 = vmatprep.subr.mxu0 0.0
    %806 = vmatpush1.msra.mxu0 0.0
    %807 = vmatprep.subr.mxu0 0.0
    %808 = vmatpush1.msra.mxu0 0.0
    %809 = vmatprep.subr.mxu0 0.0
    %810 = vmatpush1.msra.mxu0 0.0
    %811 = vmatprep.subr.mxu0 0.0
    %812 = vmatpush1.msra.mxu0 0.0
    %813 = vmatprep.subr.mxu0 0.0
    %814 = vmatpush1.msra.mxu0 0.0
    %815 = vmatprep.subr.mxu0 0.0
    %816 = vmatpush1.msra.mxu0 0.0
    %817 = vmatprep.subr.mxu0 0.0
    %818 = vmatpush1.msra.mxu0 0.0
    %819 = vmatprep.subr.mxu0 0.0
    %820 = vmatpush1.msra.mxu0 0.0
    %821 = vmatprep.subr.mxu0 0.0
    %822 = vmatpush1.msra.mxu0 0.0
    %823 = vmatprep.subr.mxu0 0.0
    %824 = vmatpush1.msra.mxu0 0.0
    %825 = vmatprep.mubr.f32.mxu0 0.0
    %826 = vmatmul.mubr.f32.gmra.mrb[0].mxu0 %v756
    %v827 = vpop.f32.mrb[0].mxu0
    %v828 = vadd.f32 %v753, %v827
    %v829 = vpop.f32.mrb[0].mxu0
    %830 = vmatprep.mubr.f32.mxu0 0.0
    %831 = vmatmul.mubr.f32.gmra.mrb[0].mxu0 %v759
    %v832 = vpop.f32.mrb[0].mxu0
    %v833 = vadd.f32 %v753, %v832
    %v834 = vpop.f32.mrb[0].mxu0
    %835 = vdwg.mxu0
    %836 = vrot.lane.b32.xlu0 %v499, 8
    %v837 = vpop.permute.xlu0 %836
    %838 = vrot.lane.b32.xlu0 %v500, 8
    %v839 = vpop.permute.xlu0 %838
    %844 = vrot.lane.b32.xlu0 %v828, 12
    %v845 = vpop.permute.xlu0 %844
    %846 = vrot.lane.b32.xlu0 %v833, 12
    %v847 = vpop.permute.xlu0 %846
    %v850 = vsel %vm509, %v447, %v479
    %v851 = vsel %vm509, %v452, %v480
    %v852 = vsel %vm144, %v850, %v837
    %v853 = vsel %vm144, %v851, %v839
    %vm854 = vcmask 97280
    %v855 = vsel %vm854, %v852, %v845
    %v856 = vsel %vm854, %v853, %v847
    %vm857 = vcmask 162816
    %858 = vst.msk [vmem:[#allocation5] sm:$0xff] %vm857, %v855
    %859 = vst.msk [vmem:[#allocation5 + $0x8] sm:$0xff] %vm857, %v856
    // Predicated region
    $region22: #{tpu_custom_call.1} parent=1 // pred_check
      _
    $region23: #{tpu_custom_call.1} parent=1 // pred_check_branch
      %861 = sbr.rel (0) target = $region25
    $region24: #{tpu_custom_call.1} parent=1 // pred_region
      %s863 = ssub.s32 256, 256
      %864 = vsyncadd [#allocation4], %s863
      %s865 = sshll.u32 [#allocation5], 4
      %s866 = int_to_ptr.vmem [resolvable:$true] %s865
      %871 = dma.vmem_to_hbm [thread:$0]  %s866, 256, %s4, [#allocation4], 128, 128, 8
    $region25: #{tpu_custom_call.1} parent=1 // pred_fallthru
      _
    // Predicated region
    $region26: #{tpu_custom_call.1} parent=1 // pred_check
      _
    $region27: #{tpu_custom_call.1} parent=1 // pred_check_branch
      %873 = sbr.rel (0) target = $region29
    $region28: #{tpu_custom_call.1} parent=1 // pred_region
      %874 = dma.done [#allocation4], 256
    $region29: #{tpu_custom_call.1} parent=1 // pred_fallthru
      _
    %875 = vsyncpa [#allocation3], 1
    %876 = vsyncpa [#allocation4], 1

</llo_original>
